<compile_context>
chip_gen: v7x
topology: tpu7x:2x2x1
jax: 0.10.0
libtpu: 0.0.40
codegen_flags: <defaults>
</compile_context>

<pallas_src>
import jax
import jax.numpy as jnp
from jax.experimental import pallas as pl
from jax.experimental.pallas import tpu as pltpu

LAYER_SIZES = [8, 16, 256, 64, 32, 16, 1]   # fc1..fc5, output
HIDDEN_IN = LAYER_SIZES[:-2]                # [8, 16, 256, 64, 32]
HIDDEN_OUT = LAYER_SIZES[1:-1]              # [16, 256, 64, 32, 16]
N_HIDDEN = len(HIDDEN_OUT)

# Row offsets of each hidden layer inside the packed weight / bias buffers.
# All offsets are multiples of 16, so every static slice is (8,128)/(16,128)-aligned.
ROW_OFF = [0]
for _o in HIDDEN_OUT:
    ROW_OFF.append(ROW_OFF[-1] + _o)        # [0, 16, 272, 336, 368, 384]
WPACK_ROWS = ROW_OFF[-1]                    # 384
WPACK_LANES = max(HIDDEN_IN)                # 256
WOUT_OFF = WPACK_ROWS                       # bias-pack rows [384:400] = output weight^T
BOUT_OFF = WOUT_OFF + LAYER_SIZES[-2]       # bias-pack row  [400]     = output bias
BPACK_ROWS = BOUT_OFF + 1                   # 401


def mlp_kernel(x_ref, w_ref, b_ref, out_ref):
    """One batch tile, fully fused in VMEM. Activations carried as (features, TILE_B)."""
    h = x_ref[...]                                           # (8, TILE_B) bf16

    # Five hidden layers: bf16 MXU matmul with f32 accumulation; bias + ReLU (+ bf16
    # downcast for the next MXU feed) fused on the VPU. One jnp.dot per layer over the
    # full lane extent (no inner lane sub-tiling -> each stationary-weight load is
    # amortized over TILE_B/128 result blocks).
    for li in range(N_HIDDEN):
        off, n_out, n_in = ROW_OFF[li], HIDDEN_OUT[li], HIDDEN_IN[li]
        w = w_ref[off:off + n_out, 0:n_in]                   # (n_out, n_in) bf16 view
        b = b_ref[off:off + n_out, :]                        # (n_out, 1)    f32  view
        y = jnp.maximum(jnp.dot(w, h, preferred_element_type=jnp.float32) + b, 0.0)
        # Last hidden activation stays f32 for the VPU output reduce.
        h = y.astype(jnp.bfloat16) if li < N_HIDDEN - 1 else y

    # Output layer 16 -> 1: VPU multiply + cross-sublane reduce (no N=1 MXU push),
    # producing a lane-dense (1, TILE_B) row.
    w_out = b_ref[WOUT_OFF:WOUT_OFF + LAYER_SIZES[-2], :]    # (16, 1) f32
    b_out = b_ref[BOUT_OFF:BOUT_OFF + 1, :]                  # (1, 1)  f32
    out = jnp.sum(h * w_out, axis=0, keepdims=True) + b_out  # (1, TILE_B)
    out_ref[...] = out.astype(out_ref.dtype)


def init_params(key):
    """PyTorch nn.Linear default init: W (out, in), b (out,), U[-1/sqrt(in), 1/sqrt(in)]."""
    params = []
    for i in range(len(LAYER_SIZES) - 1):
        fan_in, fan_out = LAYER_SIZES[i], LAYER_SIZES[i + 1]
        key, kw, kb = jax.random.split(key, 3)
        bound = 1.0 / jnp.sqrt(float(fan_in))
        w = jax.random.uniform(kw, (fan_out, fan_in), jnp.float32, -bound, bound)
        b = jax.random.uniform(kb, (fan_out,), jnp.float32, -bound, bound)
        params.append((w, b))
    return params


def _pack_params(params):
    """Pack the 12 per-layer tensors into two VMEM-resident operands.

      wpack: (384, 256) bf16 -- hidden-layer weights, row-stacked, lane-padded to max fan_in
      bpack: (401, 1)   f32  -- hidden biases (rows 0..383), output weight^T (384..399),
                                output bias (400)
    """
    assert len(params) == len(LAYER_SIZES) - 1
    wpack = jnp.zeros((WPACK_ROWS, WPACK_LANES), jnp.bfloat16)
    brows = []
    for li in range(N_HIDDEN):
        w, b = params[li]
        off, n_out, n_in = ROW_OFF[li], HIDDEN_OUT[li], HIDDEN_IN[li]
        assert w.shape == (n_out, n_in)
        wpack = wpack.at[off:off + n_out, :n_in].set(w.astype(jnp.bfloat16))
        brows.append(b.reshape(n_out, 1).astype(jnp.float32))
    w_out, b_out = params[-1]                                           # (1, 16), (1,)
    brows.append(w_out.reshape(LAYER_SIZES[-2], 1).astype(jnp.float32))  # W_out^T column
    brows.append(b_out.reshape(1, 1).astype(jnp.float32))
    bpack = jnp.concatenate(brows, axis=0)                               # (401, 1)
    return wpack, bpack


def price_prediction_forward(x, params, tile_b=8192):
    """x: (B, 8) f32 -> (B, 1) f32.

    tile_b is the batch tile on the lane axis (multiple of 128). Default 8192; the
    peak VMEM live set (~16 MiB of fc2/fc3 activations at 8192) is covered by the
    explicit vmem_limit_bytes below. Keep tile_b >= ~1024 (per-grid-step overhead)
    and <= ~8192 on v5e; larger sweeps are only advisable on v6e.
    """
    B = x.shape[0]
    assert x.shape[1] == LAYER_SIZES[0]

    tile_b = max(128, (int(tile_b) // 128) * 128)
    b128 = pl.cdiv(B, 128) * 128
    # v7x has two TensorCores: keep the grid at >=2 tiles whenever the batch is big
    # enough (dimension_semantics=("parallel",) then shards the tiles across TCs),
    # but never drop below a 1024-lane tile. ceil(b128/2) rounded up to 128 keeps the
    # tail padding minimal. No-op on single-TC v5e/v6e.
    if b128 >= 2 * 1024:
        half_up = pl.cdiv(b128, 256) * 128
        tile_b = min(tile_b, max(1024, half_up))
    tile_b = min(tile_b, b128)

    b_pad = pl.cdiv(B, tile_b) * tile_b
    grid = (b_pad // tile_b,)

    # Batch on lanes: (B, 8) f32 -> (8, b_pad) bf16. Casting here (instead of in the
    # kernel) halves this single wrapper-side pass and the per-tile x DMA/VMEM; the
    # rounding is identical to the kernel's previous in-kernel bf16 cast.
    x_t = x.astype(jnp.bfloat16).T
    if b_pad != B:
        x_t = jnp.pad(x_t, ((0, 0), (0, b_pad - B)))

    wpack, bpack = _pack_params(params)

    # Explicit scoped-VMEM limit sized from the live set (every pipelined input is
    # double-buffered). 32-48 MiB: above v5e's 16 MiB default, below v7x's 64 MiB physical.
    bpack_vmem = ((BPACK_ROWS + 7) // 8) * 8 * 128 * 4          # lane-padded f32
    wpack_vmem = WPACK_ROWS * WPACK_LANES * 2
    est = (256 * tile_b * 4 + 256 * tile_b * 2 + 64 * tile_b * 4   # peak fc2/fc3 activations
           + 2 * 8 * tile_b * 2 + 2 * 8 * tile_b * 4               # double-buffered x / out blocks
           + 2 * (wpack_vmem + bpack_vmem))                        # packed params
    vmem_limit = int(min(max(32 * 1024 * 1024, 2 * est), 48 * 1024 * 1024))

    flops_per_row = 2 * sum(a * b for a, b in zip(LAYER_SIZES[:-1], LAYER_SIZES[1:]))
    cost = pl.CostEstimate(
        flops=flops_per_row * b_pad,
        transcendentals=0,
        bytes_accessed=int(x_t.size) * 2 + b_pad * 4
                       + int(wpack.size) * 2 + int(bpack.size) * 4,
    )

    out_t = pl.pallas_call(
        mlp_kernel,
        out_shape=jax.ShapeDtypeStruct((1, b_pad), jnp.float32),
        grid=grid,
        in_specs=[
            pl.BlockSpec((LAYER_SIZES[0], tile_b), lambda i: (0, i)),
            # Full block + constant index_map -> packed params stay VMEM-resident
            # across all batch grid steps (DMA'd once).
            pl.BlockSpec((WPACK_ROWS, WPACK_LANES), lambda i: (0, 0)),
            pl.BlockSpec((BPACK_ROWS, 1), lambda i: (0, 0)),
        ],
        out_specs=pl.BlockSpec((1, tile_b), lambda i: (0, i)),
        compiler_params=pltpu.CompilerParams(
            dimension_semantics=("parallel",),   # shard batch tiles across TCs on v7x
            vmem_limit_bytes=vmem_limit,
        ),
        cost_estimate=cost,
    )(x_t, wpack, bpack)

    return out_t[0, :B].reshape(B, 1)


def reference_forward_f32(x, params):
    """Pure-JAX f32 reference matching the PyTorch module."""
    h = x
    n = len(params)
    for i, (w, b) in enumerate(params):
        h = h @ w.T + b[None, :]
        if i < n - 1:
            h = jnp.maximum(h, 0.0)
    return h


def reference_forward_bf16(x, params):
    """Reference emulating the kernel's precision: bf16 matmuls with f32 accumulation
    for hidden layers, f32 for the final 16->1 layer."""
    h = x.astype(jnp.float32)
    n = len(params)
    for i, (w, b) in enumerate(params):
        if i < n - 1:
            y = jnp.dot(h.astype(jnp.bfloat16), w.T.astype(jnp.bfloat16),
                        preferred_element_type=jnp.float32) + b[None, :]
            h = jnp.maximum(y, 0.0)
        else:
            h = jnp.dot(h, w.T) + b[None, :]
    return h


if __name__ == "__main__":
    key = jax.random.PRNGKey(0)
    key, kx = jax.random.split(key)

    B = 300  # deliberately not a multiple of the tile -> exercises tail padding
    x = jax.random.normal(kx, (B, LAYER_SIZES[0]), jnp.float32)
    params = init_params(key)

    # tile_b=128 exercises multiple grid steps at this small test size;
    # the second call uses the production default path (clamps to one 384-lane tile here).
    out_tiled = price_prediction_forward(x, params, tile_b=128)
    out_default = price_prediction_forward(x, params)
    jax.block_until_ready((out_tiled, out_default))

    assert out_tiled.shape == (B, 1), out_tiled.shape
    assert out_default.shape == (B, 1), out_default.shape

    ref_bf16 = reference_forward_bf16(x, params)
    ref_f32 = reference_forward_f32(x, params)
    for out in (out_tiled, out_default):
        assert jnp.allclose(out, ref_bf16, atol=1e-2, rtol=1e-2), "mismatch vs bf16-emulating reference"
        assert jnp.allclose(out, ref_f32, atol=5e-2, rtol=5e-2), "mismatch vs f32 reference"
    assert jnp.allclose(out_tiled, out_default, atol=1e-6, rtol=1e-6), "tile-size dependence detected"

    print("KERNEL_OK")
</pallas_src>

<mosaic_0001>
module attributes {stable_mosaic.version = 11 : i64} {
  func.func @mlp_kernel(%arg0: i32, %arg1: memref<8x128xbf16, #tpu.memory_space<vmem>>, %arg2: memref<384x256xbf16, #tpu.memory_space<vmem>>, %arg3: memref<401x1xf32, #tpu.memory_space<vmem>>, %arg4: memref<1x128xf32, #tpu.memory_space<vmem>>) attributes {dimension_semantics = [#tpu.dimension_semantics<parallel>], iteration_bounds = array<i64: 3>, scalar_prefetch = 0 : i64, scratch_operands = 0 : i64, tpu.core_type = #tpu.core_type<tc>, window_params = [{transform_indices = @transform_0, window_bounds = array<i64: 8, 128>}, {pipeline_mode = #tpu.pipeline_mode<synchronous>, transform_indices = @transform_1, window_bounds = array<i64: 384, 256>}, {pipeline_mode = #tpu.pipeline_mode<synchronous>, transform_indices = @transform_2, window_bounds = array<i64: 401, 1>}, {transform_indices = @transform_3, window_bounds = array<i64: 1, 128>}]} {
    %c0 = arith.constant 0 : index
    %c0_0 = arith.constant 0 : index
    %0 = vector.load %arg1[%c0, %c0_0] : memref<8x128xbf16, #tpu.memory_space<vmem>>, vector<8x128xbf16>
    %c0_1 = arith.constant 0 : index
    %c0_2 = arith.constant 0 : index
    %1 = vector.load %arg2[%c0_1, %c0_2] : memref<384x256xbf16, #tpu.memory_space<vmem>>, vector<16x8xbf16>
    %c0_3 = arith.constant 0 : index
    %c0_4 = arith.constant 0 : index
    %2 = vector.load %arg3[%c0_3, %c0_4] : memref<401x1xf32, #tpu.memory_space<vmem>>, vector<16x1xf32>
    %cst = arith.constant dense<0.000000e+00> : vector<16x128xf32>
    %3 = tpu.matmul %1, %0, %cst {dimension_numbers = #tpu.dot_dimension_numbers<[1], [0], [0], [1], [0, 0, 1, 1], [], []>} : vector<16x8xbf16>, vector<8x128xbf16>, vector<16x128xf32> -> vector<16x128xf32>
    %4 = vector.broadcast %2 : vector<16x1xf32> to vector<16x128xf32>
    %5 = arith.addf %3, %4 : vector<16x128xf32>
    %cst_5 = arith.constant 0.000000e+00 : f32
    %6 = vector.broadcast %cst_5 : f32 to vector<16x128xf32>
    %7 = arith.maximumf %5, %6 : vector<16x128xf32>
    %8 = arith.truncf %7 : vector<16x128xf32> to vector<16x128xbf16>
    %c16 = arith.constant 16 : index
    %c0_6 = arith.constant 0 : index
    %9 = vector.load %arg2[%c16, %c0_6] : memref<384x256xbf16, #tpu.memory_space<vmem>>, vector<256x16xbf16>
    %c16_7 = arith.constant 16 : index
    %c0_8 = arith.constant 0 : index
    %10 = vector.load %arg3[%c16_7, %c0_8] : memref<401x1xf32, #tpu.memory_space<vmem>>, vector<256x1xf32>
    %cst_9 = arith.constant dense<0.000000e+00> : vector<256x128xf32>
    %11 = tpu.matmul %9, %8, %cst_9 {dimension_numbers = #tpu.dot_dimension_numbers<[1], [0], [0], [1], [0, 0, 1, 1], [], []>} : vector<256x16xbf16>, vector<16x128xbf16>, vector<256x128xf32> -> vector<256x128xf32>
    %12 = vector.broadcast %10 : vector<256x1xf32> to vector<256x128xf32>
    %13 = arith.addf %11, %12 : vector<256x128xf32>
    %cst_10 = arith.constant 0.000000e+00 : f32
    %14 = vector.broadcast %cst_10 : f32 to vector<256x128xf32>
    %15 = arith.maximumf %13, %14 : vector<256x128xf32>
    %16 = arith.truncf %15 : vector<256x128xf32> to vector<256x128xbf16>
    %c272 = arith.constant 272 : index
    %c0_11 = arith.constant 0 : index
    %17 = vector.load %arg2[%c272, %c0_11] : memref<384x256xbf16, #tpu.memory_space<vmem>>, vector<64x256xbf16>
    %c272_12 = arith.constant 272 : index
    %c0_13 = arith.constant 0 : index
    %18 = vector.load %arg3[%c272_12, %c0_13] : memref<401x1xf32, #tpu.memory_space<vmem>>, vector<64x1xf32>
    %cst_14 = arith.constant dense<0.000000e+00> : vector<64x128xf32>
    %19 = tpu.matmul %17, %16, %cst_14 {dimension_numbers = #tpu.dot_dimension_numbers<[1], [0], [0], [1], [0, 0, 1, 1], [], []>} : vector<64x256xbf16>, vector<256x128xbf16>, vector<64x128xf32> -> vector<64x128xf32>
    %20 = vector.broadcast %18 : vector<64x1xf32> to vector<64x128xf32>
    %21 = arith.addf %19, %20 : vector<64x128xf32>
    %cst_15 = arith.constant 0.000000e+00 : f32
    %22 = vector.broadcast %cst_15 : f32 to vector<64x128xf32>
    %23 = arith.maximumf %21, %22 : vector<64x128xf32>
    %24 = arith.truncf %23 : vector<64x128xf32> to vector<64x128xbf16>
    %c336 = arith.constant 336 : index
    %c0_16 = arith.constant 0 : index
    %25 = vector.load %arg2[%c336, %c0_16] : memref<384x256xbf16, #tpu.memory_space<vmem>>, vector<32x64xbf16>
    %c336_17 = arith.constant 336 : index
    %c0_18 = arith.constant 0 : index
    %26 = vector.load %arg3[%c336_17, %c0_18] : memref<401x1xf32, #tpu.memory_space<vmem>>, vector<32x1xf32>
    %cst_19 = arith.constant dense<0.000000e+00> : vector<32x128xf32>
    %27 = tpu.matmul %25, %24, %cst_19 {dimension_numbers = #tpu.dot_dimension_numbers<[1], [0], [0], [1], [0, 0, 1, 1], [], []>} : vector<32x64xbf16>, vector<64x128xbf16>, vector<32x128xf32> -> vector<32x128xf32>
    %28 = vector.broadcast %26 : vector<32x1xf32> to vector<32x128xf32>
    %29 = arith.addf %27, %28 : vector<32x128xf32>
    %cst_20 = arith.constant 0.000000e+00 : f32
    %30 = vector.broadcast %cst_20 : f32 to vector<32x128xf32>
    %31 = arith.maximumf %29, %30 : vector<32x128xf32>
    %32 = arith.truncf %31 : vector<32x128xf32> to vector<32x128xbf16>
    %c368 = arith.constant 368 : index
    %c0_21 = arith.constant 0 : index
    %33 = vector.load %arg2[%c368, %c0_21] : memref<384x256xbf16, #tpu.memory_space<vmem>>, vector<16x32xbf16>
    %c368_22 = arith.constant 368 : index
    %c0_23 = arith.constant 0 : index
    %34 = vector.load %arg3[%c368_22, %c0_23] : memref<401x1xf32, #tpu.memory_space<vmem>>, vector<16x1xf32>
    %cst_24 = arith.constant dense<0.000000e+00> : vector<16x128xf32>
    %35 = tpu.matmul %33, %32, %cst_24 {dimension_numbers = #tpu.dot_dimension_numbers<[1], [0], [0], [1], [0, 0, 1, 1], [], []>} : vector<16x32xbf16>, vector<32x128xbf16>, vector<16x128xf32> -> vector<16x128xf32>
    %36 = vector.broadcast %34 : vector<16x1xf32> to vector<16x128xf32>
    %37 = arith.addf %35, %36 : vector<16x128xf32>
    %cst_25 = arith.constant 0.000000e+00 : f32
    %38 = vector.broadcast %cst_25 : f32 to vector<16x128xf32>
    %39 = arith.maximumf %37, %38 : vector<16x128xf32>
    %c384 = arith.constant 384 : index
    %c0_26 = arith.constant 0 : index
    %40 = vector.load %arg3[%c384, %c0_26] : memref<401x1xf32, #tpu.memory_space<vmem>>, vector<16x1xf32>
    %c400 = arith.constant 400 : index
    %c0_27 = arith.constant 0 : index
    %41 = vector.load %arg3[%c400, %c0_27] : memref<401x1xf32, #tpu.memory_space<vmem>>, vector<1x1xf32>
    %42 = vector.broadcast %40 : vector<16x1xf32> to vector<16x128xf32>
    %43 = arith.mulf %39, %42 : vector<16x128xf32>
    %cst_28 = arith.constant dense<0.000000e+00> : vector<128xf32>
    %44 = vector.multi_reduction <add>, %43, %cst_28 [0] : vector<16x128xf32> to vector<128xf32>
    %45 = vector.shape_cast %44 : vector<128xf32> to vector<1x128xf32>
    %46 = vector.broadcast %41 : vector<1x1xf32> to vector<1x128xf32>
    %47 = arith.addf %45, %46 : vector<1x128xf32>
    %c0_29 = arith.constant 0 : index
    %c0_30 = arith.constant 0 : index
    %48 = vector.load %arg4[%c0_29, %c0_30] : memref<1x128xf32, #tpu.memory_space<vmem>>, vector<1x128xf32>
    tpu.vector_store %arg4[%c0_29, %c0_30], %47 {strides = array<i32>} : memref<1x128xf32, #tpu.memory_space<vmem>>, vector<1x128xf32>,
    return
  }
  func.func @transform_0(%arg0: i32) -> (i32, i32) {
    %c0_i32 = arith.constant 0 : i32
    %c0_i32_0 = arith.constant 0 : i32
    return %c0_i32, %arg0 : i32, i32
  }
  func.func @transform_1(%arg0: i32) -> (i32, i32) {
    %c0_i32 = arith.constant 0 : i32
    %c0_i32_0 = arith.constant 0 : i32
    %c0_i32_1 = arith.constant 0 : i32
    return %c0_i32, %c0_i32_0 : i32, i32
  }
  func.func @transform_2(%arg0: i32) -> (i32, i32) {
    %c0_i32 = arith.constant 0 : i32
    %c0_i32_0 = arith.constant 0 : i32
    %c0_i32_1 = arith.constant 0 : i32
    return %c0_i32, %c0_i32_0 : i32, i32
  }
  func.func @transform_3(%arg0: i32) -> (i32, i32) {
    %c0_i32 = arith.constant 0 : i32
    %c0_i32_0 = arith.constant 0 : i32
    return %c0_i32, %arg0 : i32, i32
  }
}

</mosaic_0001>

<llo_original>
// kernel: tpu_custom_call.1
$region0: #{tpu_custom_call.1}
  #allocation0 [shape = 'u32[]', space=smem, size = 0x4, offset = 0x4, fixed_abs, tag = 'smem constant byte address 0x4 - core index']
  #allocation1 [shape = 'u32[144,128]{1,0:T(1,128)}', space=vmem, size = 0x12000, scoped, tag = 'internal scratch']
  %s0 = inlined_call_operand.vmem [shape: bf16[8,384], index: 0, kind: input, shape index: {}]
  %s1 = inlined_call_operand.vmem [shape: bf16[384,256], index: 1, kind: input, shape index: {}]
  %s2 = inlined_call_operand.vmem [shape: f32[401,1], index: 2, kind: input, shape index: {}]
  %s3 = inlined_call_operand.hbm [shape: f32[1,384], index: 3, kind: output, shape index: {}]
  %s4 = sld [smem:[#allocation0]]
  $region45: #{tpu_custom_call.1} parent=0
    _
  %s6 = ssub.s32 1, %s4
  %s7 = scalar_select 0, %s6, %s4
  $region1: #{tpu_custom_call.1} parent=0
    #allocation2 [shape = 'u8[1024]{0}', space=vmem, size = 0x400, scoped, tag = 'output window, operand 0']
    #allocation3 [shape = 's32[2]{0}', space=sflag, size = 0x8, scoped, tag = 'scoped memory for tpu_custom_call.1']
    %8 = vsyncpa [#allocation3], 0
    %s9 = scalar_lea.sflag [#allocation3], 1
    %10 = vsyncpa %s9, 0
    loop: start=0, step=1, limit=5
    $region2: #{tpu_custom_call.1} parent=1 // loop_pre_header
      _
    $region3: #{tpu_custom_call.1} parent=1 // loop_header
      %s12 = sphi 0, %s16
      %p13 = scmp.ge.s32.totalorder %s12, 5
      %s22 = sphi 0, %s24
      %s25 = sphi 0, %s22
      %s26 = sphi 0, %s25
      %s42 = sphi 0, %s26
      %s46 = sphi 0, %s46
      %s48 = sphi 0, %s46
      %s49 = sphi 0, %s48
      %s63 = sphi 0, %s49
      %s67 = sphi 0, %s67
      %s69 = sphi 0, %s67
      %s70 = sphi 0, %s69
      %s84 = sphi 0, %s70
      %s90 = sphi 0, %s92
      %s93 = sphi 0, %s90
      %s94 = sphi 0, %s93
      %s110 = sphi 0, %s94
    $region4: #{tpu_custom_call.1} parent=1 // loop_header_branch
      %15 = sbr.rel (%p13) target = $region8
    $region5: #{tpu_custom_call.1} parent=1 // loop_body
      %s17 = ssub.s32 %s12, 1
      %s18 = ssub.s32 %s12, 2
      %s19 = sadd.s32 %s12, 1
      %s20 = ssub.s32 %s12, %s19
      %p21 = scmp.eq.s32.totalorder %s20, 0
      %s23 = sadd.s32 %s22, 1
      %s24 = scalar_select %p21, %s22, %s23
      %p27 = pneg %p21
      %p28 = scmp.eq.s32.totalorder %s12, 2
      %p29 = por %p27, %p28
      %p30 = scmp.ne.s32.totalorder %s22, %s25
      %p31 = scmp.eq.s32.totalorder %s12, 0
      %p32 = por %p30, %p31
      %p33 = scmp.ne.s32.totalorder %s22, %s25
      %p34 = scmp.eq.s32.totalorder %s17, 2
      %p35 = por %p33, %p34
      %p36 = scmp.ne.s32.totalorder %s25, %s26
      %p37 = scmp.eq.s32.totalorder %s17, 0
      %p38 = por %p36, %p37
      %p39 = scmp.ne.s32.totalorder %s25, %s26
      %p40 = scmp.eq.s32.totalorder %s18, 2
      %p41 = por %p39, %p40
      %p43 = scmp.ne.s32.totalorder %s26, %s42
      %p44 = scmp.eq.s32.totalorder %s18, 0
      %p45 = por %p43, %p44
      %s47 = sadd.s32 %s46, 1
      %p50 = scmp.eq.s32.totalorder %s12, 2
      %p51 = scmp.ne.s32.totalorder %s46, %s48
      %p52 = scmp.eq.s32.totalorder %s12, 0
      %p53 = por %p51, %p52
      %p54 = scmp.ne.s32.totalorder %s46, %s48
      %p55 = scmp.eq.s32.totalorder %s17, 2
      %p56 = por %p54, %p55
      %p57 = scmp.ne.s32.totalorder %s48, %s49
      %p58 = scmp.eq.s32.totalorder %s17, 0
      %p59 = por %p57, %p58
      %p60 = scmp.ne.s32.totalorder %s48, %s49
      %p61 = scmp.eq.s32.totalorder %s18, 2
      %p62 = por %p60, %p61
      %p64 = scmp.ne.s32.totalorder %s49, %s63
      %p65 = scmp.eq.s32.totalorder %s18, 0
      %p66 = por %p64, %p65
      %s68 = sadd.s32 %s67, 1
      %p71 = scmp.eq.s32.totalorder %s12, 2
      %p72 = scmp.ne.s32.totalorder %s67, %s69
      %p73 = scmp.eq.s32.totalorder %s12, 0
      %p74 = por %p72, %p73
      %p75 = scmp.ne.s32.totalorder %s67, %s69
      %p76 = scmp.eq.s32.totalorder %s17, 2
      %p77 = por %p75, %p76
      %p78 = scmp.ne.s32.totalorder %s69, %s70
      %p79 = scmp.eq.s32.totalorder %s17, 0
      %p80 = por %p78, %p79
      %p81 = scmp.ne.s32.totalorder %s69, %s70
      %p82 = scmp.eq.s32.totalorder %s18, 2
      %p83 = por %p81, %p82
      %p85 = scmp.ne.s32.totalorder %s70, %s84
      %p86 = scmp.eq.s32.totalorder %s18, 0
      %p87 = por %p85, %p86
      %s88 = ssub.s32 %s12, %s19
      %p89 = scmp.eq.s32.totalorder %s88, 0
      %s91 = sadd.s32 %s90, 1
      %s92 = scalar_select %p89, %s90, %s91
      %p95 = pneg %p89
      %p96 = scmp.eq.s32.totalorder %s12, 2
      %p97 = por %p95, %p96
      %p98 = scmp.ne.s32.totalorder %s90, %s93
      %p99 = scmp.eq.s32.totalorder %s12, 0
      %p100 = por %p98, %p99
      %p101 = scmp.ne.s32.totalorder %s90, %s93
      %p102 = scmp.eq.s32.totalorder %s17, 2
      %p103 = por %p101, %p102
      %p104 = scmp.ne.s32.totalorder %s93, %s94
      %p105 = scmp.eq.s32.totalorder %s17, 0
      %p106 = por %p104, %p105
      %p107 = scmp.ne.s32.totalorder %s93, %s94
      %p108 = scmp.eq.s32.totalorder %s18, 2
      %p109 = por %p107, %p108
      %p111 = scmp.ne.s32.totalorder %s94, %s110
      %p112 = scmp.eq.s32.totalorder %s18, 0
      %p113 = por %p111, %p112
      %p114 = scmp.le.s32.totalorder 1, %s12
      %p115 = scmp.lt.s32.totalorder %s12, 4
      %p116 = pnand %p114, %p115
      %p117 = pneg %p116
      // Predicated region
      $region9: #{tpu_custom_call.1} parent=5 // pred_check
        _
      $region10: #{tpu_custom_call.1} parent=5 // pred_check_branch
        %119 = sbr.rel (%p116) target = $region12
      $region11: #{tpu_custom_call.1} parent=5 // pred_region
        %s120 = ssub.s32 %s12, 1
        // Predicated region
        $region13: #{tpu_custom_call.1} parent=11 // pred_check
          %p121 = pneg %p59
        $region14: #{tpu_custom_call.1} parent=11 // pred_check_branch
          %123 = sbr.rel (%p121) target = $region16
        $region15: #{tpu_custom_call.1} parent=11 // pred_region
          _
        $region16: #{tpu_custom_call.1} parent=11 // pred_fallthru
          _
        // Predicated region
        $region17: #{tpu_custom_call.1} parent=11 // pred_check
          %p124 = pneg %p80
        $region18: #{tpu_custom_call.1} parent=11 // pred_check_branch
          %126 = sbr.rel (%p124) target = $region20
        $region19: #{tpu_custom_call.1} parent=11 // pred_region
          _
        $region20: #{tpu_custom_call.1} parent=11 // pred_fallthru
          _
      $region12: #{tpu_custom_call.1} parent=5 // pred_fallthru
        _
      %p127 = scmp.lt.s32.totalorder %s12, 3
      // Predicated region
      $region21: #{tpu_custom_call.1} parent=5 // pred_check
        %p128 = pneg %p127
      $region22: #{tpu_custom_call.1} parent=5 // pred_check_branch
        %130 = sbr.rel (%p128) target = $region24
      $region23: #{tpu_custom_call.1} parent=5 // pred_region
        // Predicated region
        $region25: #{tpu_custom_call.1} parent=23 // pred_check
          %p131 = pneg %p32
        $region26: #{tpu_custom_call.1} parent=23 // pred_check_branch
          %133 = sbr.rel (%p131) target = $region28
        $region27: #{tpu_custom_call.1} parent=23 // pred_region
          %p134 = scmp.lt.s32.totalorder %s12, 2
          %s135 = scalar_select %p134, %s12, 2
          %s136 = smul.addr %s135, 4
          %s137 = scalar_lea.vmem %s0, %s136
        $region28: #{tpu_custom_call.1} parent=23 // pred_fallthru
          _
      $region24: #{tpu_custom_call.1} parent=5 // pred_fallthru
        _
      %p138 = scmp.le.s32.totalorder 1, %s12
      %p139 = scmp.lt.s32.totalorder %s12, 4
      %p140 = pnand %p138, %p139
      %p141 = pneg %p140
      // Predicated region
      $region29: #{tpu_custom_call.1} parent=5 // pred_check
        _
      $region30: #{tpu_custom_call.1} parent=5 // pred_check_branch
        %143 = sbr.rel (%p140) target = $region32
      $region31: #{tpu_custom_call.1} parent=5 // pred_region
        %s144 = ssub.s32 %s12, 1
        %p145 = scmp.lt.s32.totalorder %s17, 2
        %s146 = scalar_select %p145, %s17, 2
        %s147 = smul.addr %s146, 4
        %s148 = scalar_lea.vmem %s0, %s147
        %p149 = pneg %p38
        %p150 = pneg %p35
        %p151 = pneg %p59
        %p152 = pneg %p56
        %p153 = pneg %p80
        %p154 = pneg %p77
        %p155 = pneg %p106
        %p156 = pneg %p103
        %s157 = sand.u32 %s93, 1
        %s158 = scalar_lea.sflag [#allocation3], %s157
        %s159 = sand.u32 %s93, 1
        %s160 = scalar_lea.vmem [#allocation2], %s159
        %p161 = scmp.lt.s32.totalorder %s17, 2
        %s162 = scalar_select %p161, %s17, 2
        %s163 = smul.addr %s162, 4
        %s164 = scalar_lea.vmem %s0, %s163
        %v166 = vld [vmem:[%s164] sm:$0xf]
        %v167 = vld [vmem:[%s1] sm:$0xf]
        %v168 = vld [vmem:[%s1 + $0x8] sm:$0xf]
        %v169 = vld [vmem:[%s2] sm:$0xff]
        %v170 = vld [vmem:[%s2 + $0x8] sm:$0xff]
        %172 = vset.pattern.permute.xlu0 0
        %173 = vperm.xlu0 %172, %v169
        %v174 = vpop.permute.xlu0 %173
        %177 = vset.pattern.permute.xlu0 0
        %178 = vperm.xlu0 %177, %v170
        %v179 = vpop.permute.xlu0 %178
        %v183 = vunpack.c.l.b16 %v167
        %v184 = vunpack.c.l.b16 %v168
        %v185 = vpack.c.b16 %v184, %v183
        %vm186 = vcmask 64512
        %v188 = vsel %vm186, %v185, 0
        %vm190 = vcmask 1043456
        %v192 = vsel %vm190, %v166, 0
        %194 = vmatprep.subr.bf16.mxu0 0
        %195 = vmatpush1.bf16.msra.mxu0 %v192
        %196 = vmatprep.subr.bf16.mxu0 0
        %197 = vmatpush1.bf16.msra.mxu0 0
        %198 = vmatprep.subr.bf16.mxu0 0
        %199 = vmatpush1.bf16.msra.mxu0 0
        %200 = vmatprep.subr.bf16.mxu0 0
        %201 = vmatpush1.bf16.msra.mxu0 0
        %202 = vmatprep.subr.bf16.mxu0 0
        %203 = vmatpush1.bf16.msra.mxu0 0
        %204 = vmatprep.subr.bf16.mxu0 0
        %205 = vmatpush1.bf16.msra.mxu0 0
        %206 = vmatprep.subr.bf16.mxu0 0
        %207 = vmatpush1.bf16.msra.mxu0 0
        %208 = vmatprep.subr.bf16.mxu0 0
        %209 = vmatpush1.bf16.msra.mxu0 0
        %210 = vmatprep.subr.bf16.mxu0 0
        %211 = vmatpush1.bf16.msra.mxu0 0
        %212 = vmatprep.subr.bf16.mxu0 0
        %213 = vmatpush1.bf16.msra.mxu0 0
        %214 = vmatprep.subr.bf16.mxu0 0
        %215 = vmatpush1.bf16.msra.mxu0 0
        %216 = vmatprep.subr.bf16.mxu0 0
        %217 = vmatpush1.bf16.msra.mxu0 0
        %218 = vmatprep.subr.bf16.mxu0 0
        %219 = vmatpush1.bf16.msra.mxu0 0
        %220 = vmatprep.subr.bf16.mxu0 0
        %221 = vmatpush1.bf16.msra.mxu0 0
        %222 = vmatprep.subr.bf16.mxu0 0
        %223 = vmatpush1.bf16.msra.mxu0 0
        %224 = vmatprep.subr.bf16.mxu0 0
        %225 = vmatpush1.bf16.msra.mxu0 0
        %226 = vmatprep.mubr.bf16.mxu0 0
        %227 = vmatmul.mubr.bf16.gmra.mrb[0].mxu0 %v188
        %v228 = vpop.f32.mrb[0].mxu0
        %v229 = vadd.f32 %v174, %v228
        %v230 = vpop.f32.mrb[0].mxu0
        %v231 = vpop.f32.mrb[0].mxu0
        %v232 = vadd.f32 %v179, %v231
        %v233 = vpop.f32.mrb[0].mxu0
        %234 = vdwg.mxu0
        %v235 = vmax.f32 %v229, 0.0
        %v236 = vmax.f32 %v232, 0.0
        %v237 = vpack.c.bf16 %v236, %v235
        %v238 = vld [vmem:[%s1 + $0x10] sm:$0xf]
        %v239 = vld [vmem:[%s1 + $0x18] sm:$0xf]
        %v240 = vld [vmem:[%s1 + $0x20] sm:$0xf]
        %v241 = vld [vmem:[%s1 + $0x28] sm:$0xf]
        %v242 = vld [vmem:[%s1 + $0x30] sm:$0xf]
        %v243 = vld [vmem:[%s1 + $0x38] sm:$0xf]
        %v244 = vld [vmem:[%s1 + $0x40] sm:$0xf]
        %v245 = vld [vmem:[%s1 + $0x48] sm:$0xf]
        %v246 = vld [vmem:[%s1 + $0x50] sm:$0xf]
        %v247 = vld [vmem:[%s1 + $0x58] sm:$0xf]
        %v248 = vld [vmem:[%s1 + $0x60] sm:$0xf]
        %v249 = vld [vmem:[%s1 + $0x68] sm:$0xf]
        %v250 = vld [vmem:[%s1 + $0x70] sm:$0xf]
        %v251 = vld [vmem:[%s1 + $0x78] sm:$0xf]
        %v252 = vld [vmem:[%s1 + $0x80] sm:$0xf]
        %v253 = vld [vmem:[%s1 + $0x88] sm:$0xf]
        %v254 = vld [vmem:[%s1 + $0x90] sm:$0xf]
        %v255 = vld [vmem:[%s1 + $0x98] sm:$0xf]
        %v256 = vld [vmem:[%s1 + $0xa0] sm:$0xf]
        %v257 = vld [vmem:[%s1 + $0xa8] sm:$0xf]
        %v258 = vld [vmem:[%s1 + $0xb0] sm:$0xf]
        %v259 = vld [vmem:[%s1 + $0xb8] sm:$0xf]
        %v260 = vld [vmem:[%s1 + $0xc0] sm:$0xf]
        %v261 = vld [vmem:[%s1 + $0xc8] sm:$0xf]
        %v262 = vld [vmem:[%s1 + $0xd0] sm:$0xf]
        %v263 = vld [vmem:[%s1 + $0xd8] sm:$0xf]
        %v264 = vld [vmem:[%s1 + $0xe0] sm:$0xf]
        %v265 = vld [vmem:[%s1 + $0xe8] sm:$0xf]
        %v266 = vld [vmem:[%s1 + $0xf0] sm:$0xf]
        %v267 = vld [vmem:[%s1 + $0xf8] sm:$0xf]
        %v268 = vld [vmem:[%s1 + $0x100] sm:$0xf]
        %v269 = vld [vmem:[%s1 + $0x108] sm:$0xf]
        %v270 = vld [vmem:[%s2 + $0x10] sm:$0xff]
        %v271 = vld [vmem:[%s2 + $0x18] sm:$0xff]
        %v272 = vld [vmem:[%s2 + $0x20] sm:$0xff]
        %v273 = vld [vmem:[%s2 + $0x28] sm:$0xff]
        %v274 = vld [vmem:[%s2 + $0x30] sm:$0xff]
        %v275 = vld [vmem:[%s2 + $0x38] sm:$0xff]
        %v276 = vld [vmem:[%s2 + $0x40] sm:$0xff]
        %v277 = vld [vmem:[%s2 + $0x48] sm:$0xff]
        %v278 = vld [vmem:[%s2 + $0x50] sm:$0xff]
        %v279 = vld [vmem:[%s2 + $0x58] sm:$0xff]
        %v280 = vld [vmem:[%s2 + $0x60] sm:$0xff]
        %v281 = vld [vmem:[%s2 + $0x68] sm:$0xff]
        %v282 = vld [vmem:[%s2 + $0x70] sm:$0xff]
        %v283 = vld [vmem:[%s2 + $0x78] sm:$0xff]
        %v284 = vld [vmem:[%s2 + $0x80] sm:$0xff]
        %v285 = vld [vmem:[%s2 + $0x88] sm:$0xff]
        %v286 = vld [vmem:[%s2 + $0x90] sm:$0xff]
        %v287 = vld [vmem:[%s2 + $0x98] sm:$0xff]
        %v288 = vld [vmem:[%s2 + $0xa0] sm:$0xff]
        %v289 = vld [vmem:[%s2 + $0xa8] sm:$0xff]
        %v290 = vld [vmem:[%s2 + $0xb0] sm:$0xff]
        %v291 = vld [vmem:[%s2 + $0xb8] sm:$0xff]
        %v292 = vld [vmem:[%s2 + $0xc0] sm:$0xff]
        %v293 = vld [vmem:[%s2 + $0xc8] sm:$0xff]
        %v294 = vld [vmem:[%s2 + $0xd0] sm:$0xff]
        %v295 = vld [vmem:[%s2 + $0xd8] sm:$0xff]
        %v296 = vld [vmem:[%s2 + $0xe0] sm:$0xff]
        %v297 = vld [vmem:[%s2 + $0xe8] sm:$0xff]
        %v298 = vld [vmem:[%s2 + $0xf0] sm:$0xff]
        %v299 = vld [vmem:[%s2 + $0xf8] sm:$0xff]
        %v300 = vld [vmem:[%s2 + $0x100] sm:$0xff]
        %v301 = vld [vmem:[%s2 + $0x108] sm:$0xff]
        %303 = vset.pattern.permute.xlu0 0
        %304 = vperm.xlu0 %303, %v270
        %v305 = vpop.permute.xlu0 %304
        %308 = vset.pattern.permute.xlu0 0
        %309 = vperm.xlu0 %308, %v271
        %v310 = vpop.permute.xlu0 %309
        %313 = vset.pattern.permute.xlu0 0
        %314 = vperm.xlu0 %313, %v272
        %v315 = vpop.permute.xlu0 %314
        %318 = vset.pattern.permute.xlu0 0
        %319 = vperm.xlu0 %318, %v273
        %v320 = vpop.permute.xlu0 %319
        %323 = vset.pattern.permute.xlu0 0
        %324 = vperm.xlu0 %323, %v274
        %v325 = vpop.permute.xlu0 %324
        %328 = vset.pattern.permute.xlu0 0
        %329 = vperm.xlu0 %328, %v275
        %v330 = vpop.permute.xlu0 %329
        %333 = vset.pattern.permute.xlu0 0
        %334 = vperm.xlu0 %333, %v276
        %v335 = vpop.permute.xlu0 %334
        %338 = vset.pattern.permute.xlu0 0
        %339 = vperm.xlu0 %338, %v277
        %v340 = vpop.permute.xlu0 %339
        %343 = vset.pattern.permute.xlu0 0
        %344 = vperm.xlu0 %343, %v278
        %v345 = vpop.permute.xlu0 %344
        %348 = vset.pattern.permute.xlu0 0
        %349 = vperm.xlu0 %348, %v279
        %v350 = vpop.permute.xlu0 %349
        %353 = vset.pattern.permute.xlu0 0
        %354 = vperm.xlu0 %353, %v280
        %v355 = vpop.permute.xlu0 %354
        %358 = vset.pattern.permute.xlu0 0
        %359 = vperm.xlu0 %358, %v281
        %v360 = vpop.permute.xlu0 %359
        %363 = vset.pattern.permute.xlu0 0
        %364 = vperm.xlu0 %363, %v282
        %v365 = vpop.permute.xlu0 %364
        %368 = vset.pattern.permute.xlu0 0
        %369 = vperm.xlu0 %368, %v283
        %v370 = vpop.permute.xlu0 %369
        %373 = vset.pattern.permute.xlu0 0
        %374 = vperm.xlu0 %373, %v284
        %v375 = vpop.permute.xlu0 %374
        %378 = vset.pattern.permute.xlu0 0
        %379 = vperm.xlu0 %378, %v285
        %v380 = vpop.permute.xlu0 %379
        %383 = vset.pattern.permute.xlu0 0
        %384 = vperm.xlu0 %383, %v286
        %v385 = vpop.permute.xlu0 %384
        %388 = vset.pattern.permute.xlu0 0
        %389 = vperm.xlu0 %388, %v287
        %v390 = vpop.permute.xlu0 %389
        %393 = vset.pattern.permute.xlu0 0
        %394 = vperm.xlu0 %393, %v288
        %v395 = vpop.permute.xlu0 %394
        %398 = vset.pattern.permute.xlu0 0
        %399 = vperm.xlu0 %398, %v289
        %v400 = vpop.permute.xlu0 %399
        %403 = vset.pattern.permute.xlu0 0
        %404 = vperm.xlu0 %403, %v290
        %v405 = vpop.permute.xlu0 %404
        %408 = vset.pattern.permute.xlu0 0
        %409 = vperm.xlu0 %408, %v291
        %v410 = vpop.permute.xlu0 %409
        %413 = vset.pattern.permute.xlu0 0
        %414 = vperm.xlu0 %413, %v292
        %v415 = vpop.permute.xlu0 %414
        %418 = vset.pattern.permute.xlu0 0
        %419 = vperm.xlu0 %418, %v293
        %v420 = vpop.permute.xlu0 %419
        %423 = vset.pattern.permute.xlu0 0
        %424 = vperm.xlu0 %423, %v294
        %v425 = vpop.permute.xlu0 %424
        %428 = vset.pattern.permute.xlu0 0
        %429 = vperm.xlu0 %428, %v295
        %v430 = vpop.permute.xlu0 %429
        %433 = vset.pattern.permute.xlu0 0
        %434 = vperm.xlu0 %433, %v296
        %v435 = vpop.permute.xlu0 %434
        %438 = vset.pattern.permute.xlu0 0
        %439 = vperm.xlu0 %438, %v297
        %v440 = vpop.permute.xlu0 %439
        %443 = vset.pattern.permute.xlu0 0
        %444 = vperm.xlu0 %443, %v298
        %v445 = vpop.permute.xlu0 %444
        %448 = vset.pattern.permute.xlu0 0
        %449 = vperm.xlu0 %448, %v299
        %v450 = vpop.permute.xlu0 %449
        %453 = vset.pattern.permute.xlu0 0
        %454 = vperm.xlu0 %453, %v300
        %v455 = vpop.permute.xlu0 %454
        %458 = vset.pattern.permute.xlu0 0
        %459 = vperm.xlu0 %458, %v301
        %v460 = vpop.permute.xlu0 %459
        %v494 = vunpack.c.l.b16 %v238
        %v495 = vunpack.c.l.b16 %v239
        %v496 = vunpack.c.l.b16 %v240
        %v497 = vunpack.c.l.b16 %v241
        %v498 = vunpack.c.l.b16 %v242
        %v499 = vunpack.c.l.b16 %v243
        %v500 = vunpack.c.l.b16 %v244
        %v501 = vunpack.c.l.b16 %v245
        %v502 = vunpack.c.l.b16 %v246
        %v503 = vunpack.c.l.b16 %v247
        %v504 = vunpack.c.l.b16 %v248
        %v505 = vunpack.c.l.b16 %v249
        %v506 = vunpack.c.l.b16 %v250
        %v507 = vunpack.c.l.b16 %v251
        %v508 = vunpack.c.l.b16 %v252
        %v509 = vunpack.c.l.b16 %v253
        %v510 = vunpack.c.l.b16 %v254
        %v511 = vunpack.c.l.b16 %v255
        %v512 = vunpack.c.l.b16 %v256
        %v513 = vunpack.c.l.b16 %v257
        %v514 = vunpack.c.l.b16 %v258
        %v515 = vunpack.c.l.b16 %v259
        %v516 = vunpack.c.l.b16 %v260
        %v517 = vunpack.c.l.b16 %v261
        %v518 = vunpack.c.l.b16 %v262
        %v519 = vunpack.c.l.b16 %v263
        %v520 = vunpack.c.l.b16 %v264
        %v521 = vunpack.c.l.b16 %v265
        %v522 = vunpack.c.l.b16 %v266
        %v523 = vunpack.c.l.b16 %v267
        %v524 = vunpack.c.l.b16 %v268
        %v525 = vunpack.c.l.b16 %v269
        %v526 = vpack.c.b16 %v495, %v494
        %v527 = vpack.c.b16 %v497, %v496
        %v528 = vpack.c.b16 %v499, %v498
        %v529 = vpack.c.b16 %v501, %v500
        %v530 = vpack.c.b16 %v503, %v502
        %v531 = vpack.c.b16 %v505, %v504
        %v532 = vpack.c.b16 %v507, %v506
        %v533 = vpack.c.b16 %v509, %v508
        %v534 = vpack.c.b16 %v511, %v510
        %v535 = vpack.c.b16 %v513, %v512
        %v536 = vpack.c.b16 %v515, %v514
        %v537 = vpack.c.b16 %v517, %v516
        %v538 = vpack.c.b16 %v519, %v518
        %v539 = vpack.c.b16 %v521, %v520
        %v540 = vpack.c.b16 %v523, %v522
        %v541 = vpack.c.b16 %v525, %v524
        %vm542 = vcmask 130048
        %v544 = vsel %vm542, %v526, 0
        %v547 = vsel %vm542, %v527, 0
        %v550 = vsel %vm542, %v528, 0
        %v553 = vsel %vm542, %v529, 0
        %v556 = vsel %vm542, %v530, 0
        %v559 = vsel %vm542, %v531, 0
        %v562 = vsel %vm542, %v532, 0
        %v565 = vsel %vm542, %v533, 0
        %v568 = vsel %vm542, %v534, 0
        %v571 = vsel %vm542, %v535, 0
        %v574 = vsel %vm542, %v536, 0
        %v577 = vsel %vm542, %v537, 0
        %v580 = vsel %vm542, %v538, 0
        %v583 = vsel %vm542, %v539, 0
        %v586 = vsel %vm542, %v540, 0
        %v589 = vsel %vm542, %v541, 0
        %591 = vmatprep.subr.bf16.mxu0 0
        %592 = vmatpush1.bf16.msra.mxu0 %v237
        %593 = vmatprep.subr.bf16.mxu0 0
        %594 = vmatpush1.bf16.msra.mxu0 0
        %595 = vmatprep.subr.bf16.mxu0 0
        %596 = vmatpush1.bf16.msra.mxu0 0
        %597 = vmatprep.subr.bf16.mxu0 0
        %598 = vmatpush1.bf16.msra.mxu0 0
        %599 = vmatprep.subr.bf16.mxu0 0
        %600 = vmatpush1.bf16.msra.mxu0 0
        %601 = vmatprep.subr.bf16.mxu0 0
        %602 = vmatpush1.bf16.msra.mxu0 0
        %603 = vmatprep.subr.bf16.mxu0 0
        %604 = vmatpush1.bf16.msra.mxu0 0
        %605 = vmatprep.subr.bf16.mxu0 0
        %606 = vmatpush1.bf16.msra.mxu0 0
        %607 = vmatprep.subr.bf16.mxu0 0
        %608 = vmatpush1.bf16.msra.mxu0 0
        %609 = vmatprep.subr.bf16.mxu0 0
        %610 = vmatpush1.bf16.msra.mxu0 0
        %611 = vmatprep.subr.bf16.mxu0 0
        %612 = vmatpush1.bf16.msra.mxu0 0
        %613 = vmatprep.subr.bf16.mxu0 0
        %614 = vmatpush1.bf16.msra.mxu0 0
        %615 = vmatprep.subr.bf16.mxu0 0
        %616 = vmatpush1.bf16.msra.mxu0 0
        %617 = vmatprep.subr.bf16.mxu0 0
        %618 = vmatpush1.bf16.msra.mxu0 0
        %619 = vmatprep.subr.bf16.mxu0 0
        %620 = vmatpush1.bf16.msra.mxu0 0
        %621 = vmatprep.subr.bf16.mxu0 0
        %622 = vmatpush1.bf16.msra.mxu0 0
        %623 = vmatprep.mubr.bf16.mxu0 0
        %624 = vmatmul.mubr.bf16.gmra.mrb[0].mxu0 %v544
        %v625 = vpop.f32.mrb[0].mxu0
        %v626 = vadd.f32 %v305, %v625
        %v627 = vpop.f32.mrb[0].mxu0
        %v628 = vpop.f32.mrb[0].mxu0
        %v629 = vadd.f32 %v310, %v628
        %v630 = vpop.f32.mrb[0].mxu0
        %631 = vmatprep.mubr.bf16.mxu0 0
        %632 = vmatmul.mubr.bf16.gmra.mrb[0].mxu0 %v547
        %v633 = vpop.f32.mrb[0].mxu0
        %v634 = vadd.f32 %v315, %v633
        %v635 = vpop.f32.mrb[0].mxu0
        %v636 = vpop.f32.mrb[0].mxu0
        %v637 = vadd.f32 %v320, %v636
        %v638 = vpop.f32.mrb[0].mxu0
        %639 = vmatprep.mubr.bf16.mxu0 0
        %640 = vmatmul.mubr.bf16.gmra.mrb[0].mxu0 %v550
        %v641 = vpop.f32.mrb[0].mxu0
        %v642 = vadd.f32 %v325, %v641
        %v643 = vpop.f32.mrb[0].mxu0
        %v644 = vpop.f32.mrb[0].mxu0
        %v645 = vadd.f32 %v330, %v644
        %v646 = vpop.f32.mrb[0].mxu0
        %647 = vmatprep.mubr.bf16.mxu0 0
        %648 = vmatmul.mubr.bf16.gmra.mrb[0].mxu0 %v553
        %v649 = vpop.f32.mrb[0].mxu0
        %v650 = vadd.f32 %v335, %v649
        %v651 = vpop.f32.mrb[0].mxu0
        %v652 = vpop.f32.mrb[0].mxu0
        %v653 = vadd.f32 %v340, %v652
        %v654 = vpop.f32.mrb[0].mxu0
        %655 = vmatprep.mubr.bf16.mxu0 0
        %656 = vmatmul.mubr.bf16.gmra.mrb[0].mxu0 %v556
        %v657 = vpop.f32.mrb[0].mxu0
        %v658 = vadd.f32 %v345, %v657
        %v659 = vpop.f32.mrb[0].mxu0
        %v660 = vpop.f32.mrb[0].mxu0
        %v661 = vadd.f32 %v350, %v660
        %v662 = vpop.f32.mrb[0].mxu0
        %663 = vmatprep.mubr.bf16.mxu0 0
        %664 = vmatmul.mubr.bf16.gmra.mrb[0].mxu0 %v559
        %v665 = vpop.f32.mrb[0].mxu0
        %v666 = vadd.f32 %v355, %v665
        %v667 = vpop.f32.mrb[0].mxu0
        %v668 = vpop.f32.mrb[0].mxu0
        %v669 = vadd.f32 %v360, %v668
        %v670 = vpop.f32.mrb[0].mxu0
        %671 = vmatprep.mubr.bf16.mxu0 0
        %672 = vmatmul.mubr.bf16.gmra.mrb[0].mxu0 %v562
        %v673 = vpop.f32.mrb[0].mxu0
        %v674 = vadd.f32 %v365, %v673
        %v675 = vpop.f32.mrb[0].mxu0
        %v676 = vpop.f32.mrb[0].mxu0
        %v677 = vadd.f32 %v370, %v676
        %v678 = vpop.f32.mrb[0].mxu0
        %679 = vmatprep.mubr.bf16.mxu0 0
        %680 = vmatmul.mubr.bf16.gmra.mrb[0].mxu0 %v565
        %v681 = vpop.f32.mrb[0].mxu0
        %v682 = vadd.f32 %v375, %v681
        %v683 = vpop.f32.mrb[0].mxu0
        %v684 = vpop.f32.mrb[0].mxu0
        %v685 = vadd.f32 %v380, %v684
        %v686 = vpop.f32.mrb[0].mxu0
        %687 = vmatprep.mubr.bf16.mxu0 0
        %688 = vmatmul.mubr.bf16.gmra.mrb[0].mxu0 %v568
        %v689 = vpop.f32.mrb[0].mxu0
        %v690 = vadd.f32 %v385, %v689
        %v691 = vpop.f32.mrb[0].mxu0
        %v692 = vpop.f32.mrb[0].mxu0
        %v693 = vadd.f32 %v390, %v692
        %v694 = vpop.f32.mrb[0].mxu0
        %695 = vmatprep.mubr.bf16.mxu0 0
        %696 = vmatmul.mubr.bf16.gmra.mrb[0].mxu0 %v571
        %v697 = vpop.f32.mrb[0].mxu0
        %v698 = vadd.f32 %v395, %v697
        %v699 = vpop.f32.mrb[0].mxu0
        %v700 = vpop.f32.mrb[0].mxu0
        %v701 = vadd.f32 %v400, %v700
        %v702 = vpop.f32.mrb[0].mxu0
        %703 = vmatprep.mubr.bf16.mxu0 0
        %704 = vmatmul.mubr.bf16.gmra.mrb[0].mxu0 %v574
        %v705 = vpop.f32.mrb[0].mxu0
        %v706 = vadd.f32 %v405, %v705
        %v707 = vpop.f32.mrb[0].mxu0
        %v708 = vpop.f32.mrb[0].mxu0
        %v709 = vadd.f32 %v410, %v708
        %v710 = vpop.f32.mrb[0].mxu0
        %711 = vmatprep.mubr.bf16.mxu0 0
        %712 = vmatmul.mubr.bf16.gmra.mrb[0].mxu0 %v577
        %v713 = vpop.f32.mrb[0].mxu0
        %v714 = vadd.f32 %v415, %v713
        %v715 = vpop.f32.mrb[0].mxu0
        %v716 = vpop.f32.mrb[0].mxu0
        %v717 = vadd.f32 %v420, %v716
        %v718 = vpop.f32.mrb[0].mxu0
        %719 = vmatprep.mubr.bf16.mxu0 0
        %720 = vmatmul.mubr.bf16.gmra.mrb[0].mxu0 %v580
        %v721 = vpop.f32.mrb[0].mxu0
        %v722 = vadd.f32 %v425, %v721
        %v723 = vpop.f32.mrb[0].mxu0
        %v724 = vpop.f32.mrb[0].mxu0
        %v725 = vadd.f32 %v430, %v724
        %v726 = vpop.f32.mrb[0].mxu0
        %727 = vmatprep.mubr.bf16.mxu0 0
        %728 = vmatmul.mubr.bf16.gmra.mrb[0].mxu0 %v583
        %v729 = vpop.f32.mrb[0].mxu0
        %v730 = vadd.f32 %v435, %v729
        %v731 = vpop.f32.mrb[0].mxu0
        %v732 = vpop.f32.mrb[0].mxu0
        %v733 = vadd.f32 %v440, %v732
        %v734 = vpop.f32.mrb[0].mxu0
        %735 = vmatprep.mubr.bf16.mxu0 0
        %736 = vmatmul.mubr.bf16.gmra.mrb[0].mxu0 %v586
        %v737 = vpop.f32.mrb[0].mxu0
        %v738 = vadd.f32 %v445, %v737
        %v739 = vpop.f32.mrb[0].mxu0
        %v740 = vpop.f32.mrb[0].mxu0
        %v741 = vadd.f32 %v450, %v740
        %v742 = vpop.f32.mrb[0].mxu0
        %743 = vmatprep.mubr.bf16.mxu0 0
        %744 = vmatmul.mubr.bf16.gmra.mrb[0].mxu0 %v589
        %v745 = vpop.f32.mrb[0].mxu0
        %v746 = vadd.f32 %v455, %v745
        %v747 = vpop.f32.mrb[0].mxu0
        %v748 = vpop.f32.mrb[0].mxu0
        %v749 = vadd.f32 %v460, %v748
        %v750 = vpop.f32.mrb[0].mxu0
        %751 = vdwg.mxu0
        %v752 = vmax.f32 %v626, 0.0
        %v753 = vmax.f32 %v629, 0.0
        %v754 = vmax.f32 %v634, 0.0
        %v755 = vmax.f32 %v637, 0.0
        %v756 = vmax.f32 %v642, 0.0
        %v757 = vmax.f32 %v645, 0.0
        %v758 = vmax.f32 %v650, 0.0
        %v759 = vmax.f32 %v653, 0.0
        %v760 = vmax.f32 %v658, 0.0
        %v761 = vmax.f32 %v661, 0.0
        %v762 = vmax.f32 %v666, 0.0
        %v763 = vmax.f32 %v669, 0.0
        %v764 = vmax.f32 %v674, 0.0
        %v765 = vmax.f32 %v677, 0.0
        %v766 = vmax.f32 %v682, 0.0
        %v767 = vmax.f32 %v685, 0.0
        %v768 = vmax.f32 %v690, 0.0
        %v769 = vmax.f32 %v693, 0.0
        %v770 = vmax.f32 %v698, 0.0
        %v771 = vmax.f32 %v701, 0.0
        %v772 = vmax.f32 %v706, 0.0
        %v773 = vmax.f32 %v709, 0.0
        %v774 = vmax.f32 %v714, 0.0
        %v775 = vmax.f32 %v717, 0.0
        %v776 = vmax.f32 %v722, 0.0
        %v777 = vmax.f32 %v725, 0.0
        %v778 = vmax.f32 %v730, 0.0
        %v779 = vmax.f32 %v733, 0.0
        %v780 = vmax.f32 %v738, 0.0
        %v781 = vmax.f32 %v741, 0.0
        %v782 = vmax.f32 %v746, 0.0
        %v783 = vmax.f32 %v749, 0.0
        %v784 = vpack.c.bf16 %v753, %v752
        %v785 = vpack.c.bf16 %v755, %v754
        %v786 = vpack.c.bf16 %v757, %v756
        %v787 = vpack.c.bf16 %v759, %v758
        %v788 = vpack.c.bf16 %v761, %v760
        %v789 = vpack.c.bf16 %v763, %v762
        %v790 = vpack.c.bf16 %v765, %v764
        %v791 = vpack.c.bf16 %v767, %v766
        %v792 = vpack.c.bf16 %v769, %v768
        %v793 = vpack.c.bf16 %v771, %v770
        %v794 = vpack.c.bf16 %v773, %v772
        %v795 = vpack.c.bf16 %v775, %v774
        %v796 = vpack.c.bf16 %v777, %v776
        %v797 = vpack.c.bf16 %v779, %v778
        %v798 = vpack.c.bf16 %v781, %v780
        %v799 = vpack.c.bf16 %v783, %v782
        %v800 = vld [vmem:[%s1 + $0x110] sm:$0xff]
        %v801 = vld [vmem:[%s1 + $0x118] sm:$0xff]
        %v802 = vld [vmem:[%s1 + $0x120] sm:$0xff]
        %v803 = vld [vmem:[%s1 + $0x128] sm:$0xff]
        %v804 = vld [vmem:[%s1 + $0x130] sm:$0xff]
        %v805 = vld [vmem:[%s1 + $0x138] sm:$0xff]
        %v806 = vld [vmem:[%s1 + $0x140] sm:$0xff]
        %v807 = vld [vmem:[%s1 + $0x148] sm:$0xff]
        %v808 = vld [vmem:[%s2 + $0x110] sm:$0xff]
        %v809 = vld [vmem:[%s2 + $0x118] sm:$0xff]
        %v810 = vld [vmem:[%s2 + $0x120] sm:$0xff]
        %v811 = vld [vmem:[%s2 + $0x128] sm:$0xff]
        %v812 = vld [vmem:[%s2 + $0x130] sm:$0xff]
        %v813 = vld [vmem:[%s2 + $0x138] sm:$0xff]
        %v814 = vld [vmem:[%s2 + $0x140] sm:$0xff]
        %v815 = vld [vmem:[%s2 + $0x148] sm:$0xff]
        %817 = vset.pattern.permute.xlu0 0
        %818 = vperm.xlu0 %817, %v808
        %v819 = vpop.permute.xlu0 %818
        %822 = vset.pattern.permute.xlu0 0
        %823 = vperm.xlu0 %822, %v809
        %v824 = vpop.permute.xlu0 %823
        %827 = vset.pattern.permute.xlu0 0
        %828 = vperm.xlu0 %827, %v810
        %v829 = vpop.permute.xlu0 %828
        %832 = vset.pattern.permute.xlu0 0
        %833 = vperm.xlu0 %832, %v811
        %v834 = vpop.permute.xlu0 %833
        %837 = vset.pattern.permute.xlu0 0
        %838 = vperm.xlu0 %837, %v812
        %v839 = vpop.permute.xlu0 %838
        %842 = vset.pattern.permute.xlu0 0
        %843 = vperm.xlu0 %842, %v813
        %v844 = vpop.permute.xlu0 %843
        %847 = vset.pattern.permute.xlu0 0
        %848 = vperm.xlu0 %847, %v814
        %v849 = vpop.permute.xlu0 %848
        %852 = vset.pattern.permute.xlu0 0
        %853 = vperm.xlu0 %852, %v815
        %v854 = vpop.permute.xlu0 %853
        %v864 = vunpack.c.l.b16 %v800
        %v865 = vunpack.c.h.b16 %v800
        %v866 = vunpack.c.l.b16 %v801
        %v867 = vunpack.c.h.b16 %v801
        %v868 = vunpack.c.l.b16 %v802
        %v869 = vunpack.c.h.b16 %v802
        %v870 = vunpack.c.l.b16 %v803
        %v871 = vunpack.c.h.b16 %v803
        %v872 = vunpack.c.l.b16 %v804
        %v873 = vunpack.c.h.b16 %v804
        %v874 = vunpack.c.l.b16 %v805
        %v875 = vunpack.c.h.b16 %v805
        %v876 = vunpack.c.l.b16 %v806
        %v877 = vunpack.c.h.b16 %v806
        %v878 = vunpack.c.l.b16 %v807
        %v879 = vunpack.c.h.b16 %v807
        %v880 = vpack.c.b16 %v866, %v864
        %v881 = vpack.c.b16 %v867, %v865
        %v882 = vpack.c.b16 %v870, %v868
        %v883 = vpack.c.b16 %v871, %v869
        %v884 = vpack.c.b16 %v874, %v872
        %v885 = vpack.c.b16 %v875, %v873
        %v886 = vpack.c.b16 %v878, %v876
        %v887 = vpack.c.b16 %v879, %v877
        %896 = vmatprep.subr.bf16.mxu0 0
        %897 = vmatpush1.bf16.msra.mxu0 %v784
        %898 = vmatprep.subr.bf16.mxu0 0
        %899 = vmatpush1.bf16.msra.mxu0 %v785
        %900 = vmatprep.subr.bf16.mxu0 0
        %901 = vmatpush1.bf16.msra.mxu0 %v786
        %902 = vmatprep.subr.bf16.mxu0 0
        %903 = vmatpush1.bf16.msra.mxu0 %v787
        %904 = vmatprep.subr.bf16.mxu0 0
        %905 = vmatpush1.bf16.msra.mxu0 %v788
        %906 = vmatprep.subr.bf16.mxu0 0
        %907 = vmatpush1.bf16.msra.mxu0 %v789
        %908 = vmatprep.subr.bf16.mxu0 0
        %909 = vmatpush1.bf16.msra.mxu0 %v790
        %910 = vmatprep.subr.bf16.mxu0 0
        %911 = vmatpush1.bf16.msra.mxu0 %v791
        %912 = vmatprep.subr.bf16.mxu0 0
        %913 = vmatpush1.bf16.msra.mxu0 %v792
        %914 = vmatprep.subr.bf16.mxu0 0
        %915 = vmatpush1.bf16.msra.mxu0 %v793
        %916 = vmatprep.subr.bf16.mxu0 0
        %917 = vmatpush1.bf16.msra.mxu0 %v794
        %918 = vmatprep.subr.bf16.mxu0 0
        %919 = vmatpush1.bf16.msra.mxu0 %v795
        %920 = vmatprep.subr.bf16.mxu0 0
        %921 = vmatpush1.bf16.msra.mxu0 %v796
        %922 = vmatprep.subr.bf16.mxu0 0
        %923 = vmatpush1.bf16.msra.mxu0 %v797
        %924 = vmatprep.subr.bf16.mxu0 0
        %925 = vmatpush1.bf16.msra.mxu0 %v798
        %926 = vmatprep.subr.bf16.mxu0 0
        %927 = vmatpush1.bf16.msra.mxu0 %v799
        %928 = vmatprep.mubr.bf16.mxu0 %v881
        %929 = vmatmul.mubr.bf16.gmra.mrb[0].mxu0 %v880
        %v930 = vpop.f32.mrb[0].mxu0
        %v931 = vadd.f32 %v819, %v930
        %v932 = vpop.f32.mrb[0].mxu0
        %v933 = vpop.f32.mrb[0].mxu0
        %v934 = vadd.f32 %v824, %v933
        %v935 = vpop.f32.mrb[0].mxu0
        %936 = vmatprep.mubr.bf16.mxu0 %v883
        %937 = vmatmul.mubr.bf16.gmra.mrb[0].mxu0 %v882
        %v938 = vpop.f32.mrb[0].mxu0
        %v939 = vadd.f32 %v829, %v938
        %v940 = vpop.f32.mrb[0].mxu0
        %v941 = vpop.f32.mrb[0].mxu0
        %v942 = vadd.f32 %v834, %v941
        %v943 = vpop.f32.mrb[0].mxu0
        %944 = vmatprep.mubr.bf16.mxu0 %v885
        %945 = vmatmul.mubr.bf16.gmra.mrb[0].mxu0 %v884
        %v946 = vpop.f32.mrb[0].mxu0
        %v947 = vadd.f32 %v839, %v946
        %v948 = vpop.f32.mrb[0].mxu0
        %v949 = vpop.f32.mrb[0].mxu0
        %v950 = vadd.f32 %v844, %v949
        %v951 = vpop.f32.mrb[0].mxu0
        %952 = vmatprep.mubr.bf16.mxu0 %v887
        %953 = vmatmul.mubr.bf16.gmra.mrb[0].mxu0 %v886
        %v954 = vpop.f32.mrb[0].mxu0
        %v955 = vadd.f32 %v849, %v954
        %v956 = vpop.f32.mrb[0].mxu0
        %v957 = vpop.f32.mrb[0].mxu0
        %v958 = vadd.f32 %v854, %v957
        %v959 = vpop.f32.mrb[0].mxu0
        %960 = vdwg.mxu0
        %v961 = vmax.f32 %v931, 0.0
        %v962 = vmax.f32 %v934, 0.0
        %v963 = vmax.f32 %v939, 0.0
        %v964 = vmax.f32 %v942, 0.0
        %v965 = vmax.f32 %v947, 0.0
        %v966 = vmax.f32 %v950, 0.0
        %v967 = vmax.f32 %v955, 0.0
        %v968 = vmax.f32 %v958, 0.0
        %v969 = vpack.c.bf16 %v962, %v961
        %v970 = vpack.c.bf16 %v964, %v963
        %v971 = vpack.c.bf16 %v966, %v965
        %v972 = vpack.c.bf16 %v968, %v967
        %v973 = vld [vmem:[%s1 + $0x150] sm:$0xf]
        %v974 = vld [vmem:[%s1 + $0x158] sm:$0xf]
        %v975 = vld [vmem:[%s1 + $0x160] sm:$0xf]
        %v976 = vld [vmem:[%s1 + $0x168] sm:$0xf]
        %v977 = vld [vmem:[%s2 + $0x150] sm:$0xff]
        %v978 = vld [vmem:[%s2 + $0x158] sm:$0xff]
        %v979 = vld [vmem:[%s2 + $0x160] sm:$0xff]
        %v980 = vld [vmem:[%s2 + $0x168] sm:$0xff]
        %982 = vset.pattern.permute.xlu0 0
        %983 = vperm.xlu0 %982, %v977
        %v984 = vpop.permute.xlu0 %983
        %987 = vset.pattern.permute.xlu0 0
        %988 = vperm.xlu0 %987, %v978
        %v989 = vpop.permute.xlu0 %988
        %992 = vset.pattern.permute.xlu0 0
        %993 = vperm.xlu0 %992, %v979
        %v994 = vpop.permute.xlu0 %993
        %997 = vset.pattern.permute.xlu0 0
        %998 = vperm.xlu0 %997, %v980
        %v999 = vpop.permute.xlu0 %998
        %v1005 = vunpack.c.l.b16 %v973
        %v1006 = vunpack.c.l.b16 %v974
        %v1007 = vunpack.c.l.b16 %v975
        %v1008 = vunpack.c.l.b16 %v976
        %v1009 = vpack.c.b16 %v1006, %v1005
        %v1010 = vpack.c.b16 %v1008, %v1007
        %vm1011 = vcmask 523264
        %v1013 = vsel %vm1011, %v1009, 0
        %v1016 = vsel %vm1011, %v1010, 0
        %1018 = vmatprep.subr.bf16.mxu0 0
        %1019 = vmatpush1.bf16.msra.mxu0 %v969
        %1020 = vmatprep.subr.bf16.mxu0 0
        %1021 = vmatpush1.bf16.msra.mxu0 %v970
        %1022 = vmatprep.subr.bf16.mxu0 0
        %1023 = vmatpush1.bf16.msra.mxu0 %v971
        %1024 = vmatprep.subr.bf16.mxu0 0
        %1025 = vmatpush1.bf16.msra.mxu0 %v972
        %1026 = vmatprep.subr.bf16.mxu0 0
        %1027 = vmatpush1.bf16.msra.mxu0 0
        %1028 = vmatprep.subr.bf16.mxu0 0
        %1029 = vmatpush1.bf16.msra.mxu0 0
        %1030 = vmatprep.subr.bf16.mxu0 0
        %1031 = vmatpush1.bf16.msra.mxu0 0
        %1032 = vmatprep.subr.bf16.mxu0 0
        %1033 = vmatpush1.bf16.msra.mxu0 0
        %1034 = vmatprep.subr.bf16.mxu0 0
        %1035 = vmatpush1.bf16.msra.mxu0 0
        %1036 = vmatprep.subr.bf16.mxu0 0
        %1037 = vmatpush1.bf16.msra.mxu0 0
        %1038 = vmatprep.subr.bf16.mxu0 0
        %1039 = vmatpush1.bf16.msra.mxu0 0
        %1040 = vmatprep.subr.bf16.mxu0 0
        %1041 = vmatpush1.bf16.msra.mxu0 0
        %1042 = vmatprep.subr.bf16.mxu0 0
        %1043 = vmatpush1.bf16.msra.mxu0 0
        %1044 = vmatprep.subr.bf16.mxu0 0
        %1045 = vmatpush1.bf16.msra.mxu0 0
        %1046 = vmatprep.subr.bf16.mxu0 0
        %1047 = vmatpush1.bf16.msra.mxu0 0
        %1048 = vmatprep.subr.bf16.mxu0 0
        %1049 = vmatpush1.bf16.msra.mxu0 0
        %1050 = vmatprep.mubr.bf16.mxu0 0
        %1051 = vmatmul.mubr.bf16.gmra.mrb[0].mxu0 %v1013
        %v1052 = vpop.f32.mrb[0].mxu0
        %v1053 = vadd.f32 %v984, %v1052
        %v1054 = vpop.f32.mrb[0].mxu0
        %v1055 = vpop.f32.mrb[0].mxu0
        %v1056 = vadd.f32 %v989, %v1055
        %v1057 = vpop.f32.mrb[0].mxu0
        %1058 = vmatprep.mubr.bf16.mxu0 0
        %1059 = vmatmul.mubr.bf16.gmra.mrb[0].mxu0 %v1016
        %v1060 = vpop.f32.mrb[0].mxu0
        %v1061 = vadd.f32 %v994, %v1060
        %v1062 = vpop.f32.mrb[0].mxu0
        %v1063 = vpop.f32.mrb[0].mxu0
        %v1064 = vadd.f32 %v999, %v1063
        %v1065 = vpop.f32.mrb[0].mxu0
        %1066 = vdwg.mxu0
        %v1067 = vmax.f32 %v1053, 0.0
        %v1068 = vmax.f32 %v1056, 0.0
        %v1069 = vmax.f32 %v1061, 0.0
        %v1070 = vmax.f32 %v1064, 0.0
        %v1071 = vpack.c.bf16 %v1068, %v1067
        %v1072 = vpack.c.bf16 %v1070, %v1069
        %v1073 = vld [vmem:[%s1 + $0x170] sm:$0xf]
        %v1074 = vld [vmem:[%s1 + $0x178] sm:$0xf]
        %v1075 = vld [vmem:[%s2 + $0x170] sm:$0xff]
        %v1076 = vld [vmem:[%s2 + $0x178] sm:$0xff]
        %1078 = vset.pattern.permute.xlu0 0
        %1079 = vperm.xlu0 %1078, %v1075
        %v1080 = vpop.permute.xlu0 %1079
        %1083 = vset.pattern.permute.xlu0 0
        %1084 = vperm.xlu0 %1083, %v1076
        %v1085 = vpop.permute.xlu0 %1084
        %v1089 = vunpack.c.l.b16 %v1073
        %v1090 = vunpack.c.l.b16 %v1074
        %v1091 = vpack.c.b16 %v1090, %v1089
        %vm1092 = vcmask 261120
        %v1094 = vsel %vm1092, %v1091, 0
        %1096 = vmatprep.subr.bf16.mxu0 0
        %1097 = vmatpush1.bf16.msra.mxu0 %v1071
        %1098 = vmatprep.subr.bf16.mxu0 0
        %1099 = vmatpush1.bf16.msra.mxu0 %v1072
        %1100 = vmatprep.subr.bf16.mxu0 0
        %1101 = vmatpush1.bf16.msra.mxu0 0
        %1102 = vmatprep.subr.bf16.mxu0 0
        %1103 = vmatpush1.bf16.msra.mxu0 0
        %1104 = vmatprep.subr.bf16.mxu0 0
        %1105 = vmatpush1.bf16.msra.mxu0 0
        %1106 = vmatprep.subr.bf16.mxu0 0
        %1107 = vmatpush1.bf16.msra.mxu0 0
        %1108 = vmatprep.subr.bf16.mxu0 0
        %1109 = vmatpush1.bf16.msra.mxu0 0
        %1110 = vmatprep.subr.bf16.mxu0 0
        %1111 = vmatpush1.bf16.msra.mxu0 0
        %1112 = vmatprep.subr.bf16.mxu0 0
        %1113 = vmatpush1.bf16.msra.mxu0 0
        %1114 = vmatprep.subr.bf16.mxu0 0
        %1115 = vmatpush1.bf16.msra.mxu0 0
        %1116 = vmatprep.subr.bf16.mxu0 0
        %1117 = vmatpush1.bf16.msra.mxu0 0
        %1118 = vmatprep.subr.bf16.mxu0 0
        %1119 = vmatpush1.bf16.msra.mxu0 0
        %1120 = vmatprep.subr.bf16.mxu0 0
        %1121 = vmatpush1.bf16.msra.mxu0 0
        %1122 = vmatprep.subr.bf16.mxu0 0
        %1123 = vmatpush1.bf16.msra.mxu0 0
        %1124 = vmatprep.subr.bf16.mxu0 0
        %1125 = vmatpush1.bf16.msra.mxu0 0
        %1126 = vmatprep.subr.bf16.mxu0 0
        %1127 = vmatpush1.bf16.msra.mxu0 0
        %1128 = vmatprep.mubr.bf16.mxu0 0
        %1129 = vmatmul.mubr.bf16.gmra.mrb[0].mxu0 %v1094
        %v1130 = vpop.f32.mrb[0].mxu0
        %v1131 = vadd.f32 %v1080, %v1130
        %v1132 = vpop.f32.mrb[0].mxu0
        %v1133 = vpop.f32.mrb[0].mxu0
        %v1134 = vadd.f32 %v1085, %v1133
        %v1135 = vpop.f32.mrb[0].mxu0
        %1136 = vdwg.mxu0
        %v1137 = vmax.f32 %v1131, 0.0
        %v1138 = vmax.f32 %v1134, 0.0
        %v1139 = vld [vmem:[%s2 + $0x180] sm:$0xff]
        %v1140 = vld [vmem:[%s2 + $0x188] sm:$0xff]
        %v1141 = vld [vmem:[%s2 + $0x190] sm:$0x1]
        %1143 = vset.pattern.permute.xlu0 0
        %1144 = vperm.xlu0 %1143, %v1139
        %v1145 = vpop.permute.xlu0 %1144
        %1148 = vset.pattern.permute.xlu0 0
        %1149 = vperm.xlu0 %1148, %v1140
        %v1150 = vpop.permute.xlu0 %1149
        %v1152 = vmul.f32 %v1137, %v1145
        %v1153 = vmul.f32 %v1138, %v1150
        %v1154 = vadd.f32 %v1152, %v1153
        %v1155 = vrot.slane %v1154, 4
        %v1156 = vadd.f32 %v1154, %v1155
        %v1157 = vrot.slane %v1156, 2
        %v1158 = vadd.f32 %v1156, %v1157
        %v1159 = vrot.slane %v1158, 1
        %v1160 = vadd.f32 %v1158, %v1159
        %1162 = vset.pattern.permute.xlu0 0
        %1163 = vperm.xlu0 %1162, %v1141
        %v1164 = vpop.permute.xlu0 %1163
        %v1166 = vadd.f32 %v1160, %v1164
        %1167 = vst [vmem:[%s160] sm:$0x1] %v1166
        %s1168 = sand.u32 %s93, 1
        %s1169 = scalar_lea.sflag [#allocation3], %s1168
        %s1170 = sand.u32 %s93, 1
        %s1171 = scalar_lea.vmem [#allocation2], %s1170
        // Predicated region
        $region33: #{tpu_custom_call.1} parent=31 // pred_check
          %p1172 = pneg %p103
        $region34: #{tpu_custom_call.1} parent=31 // pred_check_branch
          %1174 = sbr.rel (%p1172) target = $region36
        $region35: #{tpu_custom_call.1} parent=31 // pred_region
          %s1176 = ssub.s32 16, 16
          %1177 = vsyncadd %s1169, %s1176
          %s1178 = smul.addr %s17, 16
          %s1179 = scalar_lea.hbm %s3, %s1178
          %s1181 = sshll.u32 %s1171, 4
          %s1182 = int_to_ptr.vmem [resolvable:$true] %s1181
          %1184 = dma.vmem_to_hbm [thread:$0]  %s1182, 16, %s1179, %s1169
        $region36: #{tpu_custom_call.1} parent=31 // pred_fallthru
          _
      $region32: #{tpu_custom_call.1} parent=5 // pred_fallthru
        _
      %p1185 = scmp.le.s32.totalorder 2, %s12
      // Predicated region
      $region37: #{tpu_custom_call.1} parent=5 // pred_check
        %p1186 = pneg %p1185
      $region38: #{tpu_custom_call.1} parent=5 // pred_check_branch
        %1188 = sbr.rel (%p1186) target = $region40
      $region39: #{tpu_custom_call.1} parent=5 // pred_region
        %s1189 = ssub.s32 %s12, 2
        // Predicated region
        $region41: #{tpu_custom_call.1} parent=39 // pred_check
          %p1190 = pneg %p109
        $region42: #{tpu_custom_call.1} parent=39 // pred_check_branch
          %1192 = sbr.rel (%p1190) target = $region44
        $region43: #{tpu_custom_call.1} parent=39 // pred_region
          %s1193 = sand.u32 %s94, 1
          %s1194 = scalar_lea.sflag [#allocation3], %s1193
          %s1195 = sand.u32 %s94, 1
          %s1196 = scalar_lea.vmem [#allocation2], %s1195
          %1197 = dma.done %s1194, 16
        $region44: #{tpu_custom_call.1} parent=39 // pred_fallthru
          _
      $region40: #{tpu_custom_call.1} parent=5 // pred_fallthru
        _
    $region6: #{tpu_custom_call.1} parent=1 // loop_footer
      %s16 = sadd.s32 1, %s12
    $region7: #{tpu_custom_call.1} parent=1 // loop_footer_branch
      %11 = sbr.rel target = $region3
    $region8: #{tpu_custom_call.1} parent=1 // loop_exit
      _
    %1198 = vsyncpa [#allocation3], 1
    %s1199 = scalar_lea.sflag [#allocation3], 1
    %1200 = vsyncpa %s1199, 1

</llo_original>
